<compile_context>
chip_gen: v5e
topology: v5e:2x2
jax: 0.10.0
libtpu: 0.0.40
codegen_flags: <defaults>
</compile_context>

<pallas_src>
import functools

import jax
import jax.numpy as jnp
from jax.experimental import pallas as pl
from jax.experimental.pallas import tpu as pltpu


# --------------------------------------------------------------------------
# Kernel
# --------------------------------------------------------------------------
def fcnet_kernel(x_ref, w_ref, b_ref, o_ref, *, depth, dim_in, dim_out, chunk):
    """Fused MLP forward over one batch tile (batch on the lane axis).

    x_ref : (dim_in, TM)              VMEM  (x^T tile)
    w_ref : (depth+2, width, width)   VMEM  packed weights (PyTorch (out,in))
                                      row 0: w0 in [:, :dim_in]
                                      rows 1..depth: hidden weights
                                      row depth+1: wl in [:dim_out, :]
    b_ref : (depth+2, width, 1)       VMEM  packed biases (same row layout)
    o_ref : (dim_out, TM)
    """
    tile_m = x_ref.shape[1]
    n_chunks = tile_m // chunk  # static

    # Hoist the (tiny, constant) weight loads out of the chunk loop.
    w0 = w_ref[0, :, :dim_in]                  # (width, dim_in)
    b0 = b_ref[0]                              # (width, 1)
    wh = [w_ref[1 + d] for d in range(depth)]  # depth x (width, width)
    bh = [b_ref[1 + d] for d in range(depth)]  # depth x (width, 1)
    wl = w_ref[depth + 1, :dim_out, :]         # (dim_out, width)
    bl = b_ref[depth + 1, :dim_out, :]         # (dim_out, 1)

    # Inner lane-chunk loop: static offsets, bounded vreg pressure per chunk,
    # and chunk c+1's matmul (MXU) can overlap chunk c's tanh (EUP).
    for c in range(n_chunks):
        lo = c * chunk  # compile-time constant
        xc = x_ref[:, pl.ds(lo, chunk)]                      # (dim_in, chunk)

        # First linear (NO activation, matching FcNet.forward).
        h = jnp.dot(w0, xc, preferred_element_type=jnp.float32) + b0

        # Hidden FcBlocks: Linear + tanh (hardware EUP tanh).
        for d in range(depth):
            h = jnp.tanh(
                jnp.dot(wh[d], h, preferred_element_type=jnp.float32) + bh[d])

        # Final linear (no activation) -> lane-dense store.
        out = jnp.dot(wl, h, preferred_element_type=jnp.float32) + bl
        o_ref[:, pl.ds(lo, chunk)] = out.astype(o_ref.dtype)


# --------------------------------------------------------------------------
# Wrapper helpers
# --------------------------------------------------------------------------
def _num_tensorcores_per_chip():
    """TensorCores per chip (v7x: 2, v5e/v6e: 1).  Probed defensively."""
    try:
        info = pltpu.get_tpu_info()
        for attr in ("num_cores", "num_tensor_cores", "tensorcore_count",
                     "cores_per_chip", "num_cores_per_chip"):
            v = getattr(info, attr, None)
            if isinstance(v, int) and v > 0:
                return v
    except Exception:
        pass
    try:
        v = getattr(jax.devices()[0], "num_cores", None)
        if isinstance(v, int) and v > 0:
            return v
    except Exception:
        pass
    return 1


def _default_chunk():
    """Lane-chunk: 256 (matches v6e/v7x 256-wide MXU), 128 on v5e."""
    try:
        kind = jax.devices()[0].device_kind.lower()
    except Exception:
        return 256
    if "v5 lite" in kind or "v5e" in kind or "v5lite" in kind:
        return 128
    return 256


def _select_tile(n, tile_m, chunk, num_tc):
    """Pick the batch tile (a multiple of `chunk`).

    Single-TC (v5e/v6e): just cap the requested tile to the padded batch --
    one big step beats several small ones.  Multi-TC (v7x): additionally make
    the grid >= num_tc and evenly divisible so both TensorCores stay busy.
    """
    n_chunks_total = pl.cdiv(n, chunk)
    tiles_per_step = max(1, min(tile_m // chunk, n_chunks_total))
    if num_tc >= 2:
        g = pl.cdiv(n_chunks_total, tiles_per_step)
        while tiles_per_step > 1 and (g < num_tc or g % num_tc != 0):
            tiles_per_step -= 1
            g = pl.cdiv(n_chunks_total, tiles_per_step)
    return tiles_per_step * chunk


def _pack_params(params, depth, dim_in, width, dim_out):
    """Pack all weights / biases into single stacked operands (wrapper-side)."""
    w_all = jnp.zeros((depth + 2, width, width), jnp.float32)
    w_all = w_all.at[0, :, :dim_in].set(params["w0"])
    if depth > 0:
        w_all = w_all.at[1:depth + 1].set(params["wh"])
    w_all = w_all.at[depth + 1, :dim_out, :].set(params["wl"])

    b_all = jnp.zeros((depth + 2, width, 1), jnp.float32)
    b_all = b_all.at[0].set(params["b0"])
    if depth > 0:
        b_all = b_all.at[1:depth + 1].set(params["bh"])
    b_all = b_all.at[depth + 1, :dim_out].set(params["bl"])
    return w_all, b_all


# --------------------------------------------------------------------------
# Forward pass
# --------------------------------------------------------------------------
def fcnet_forward(x, params, *, depth, tile_m=1024, chunk=None):
    """x: (N, dim_in) float32.  params: PyTorch-layout (out, in) weights."""
    n, dim_in = x.shape
    width = params["w0"].shape[0]
    dim_out = params["wl"].shape[0]

    if chunk is None:
        chunk = _default_chunk()
    assert chunk % 128 == 0 and chunk >= 128

    num_tc = _num_tensorcores_per_chip()
    tile_m = _select_tile(n, tile_m, chunk, num_tc)

    # Pad the (possibly ragged) batch up to a multiple of tile_m, batch->lanes.
    n_pad = pl.cdiv(n, tile_m) * tile_m
    x_t = jnp.zeros((dim_in, n_pad), x.dtype).at[:, :n].set(x.T)

    # Pack 6 tiny parameter tensors into 2 operands (fewer DMA descriptors).
    w_all, b_all = _pack_params(params, depth, dim_in, width, dim_out)

    grid = (n_pad // tile_m,)
    kernel = functools.partial(fcnet_kernel, depth=depth, dim_in=dim_in,
                               dim_out=dim_out, chunk=chunk)

    # Overhead/EUP-bound, not FLOP-heavy: give XLA the real cost.
    cost = pl.CostEstimate(
        flops=2 * n_pad * width * (dim_in + depth * width + dim_out),
        transcendentals=n_pad * depth * width,
        bytes_accessed=4 * (dim_in * n_pad + int(w_all.size) + int(b_all.size)
                            + dim_out * n_pad),
    )

    out_t = pl.pallas_call(
        kernel,
        out_shape=jax.ShapeDtypeStruct((dim_out, n_pad), x.dtype),
        grid_spec=pltpu.PrefetchScalarGridSpec(
            num_scalar_prefetch=0,
            grid=grid,
            in_specs=[
                pl.BlockSpec((dim_in, tile_m), lambda i: (0, i)),      # x^T
                pl.BlockSpec((depth + 2, width, width),
                             lambda i: (0, 0, 0)),                     # weights
                pl.BlockSpec((depth + 2, width, 1),
                             lambda i: (0, 0, 0)),                     # biases
            ],
            out_specs=pl.BlockSpec((dim_out, tile_m), lambda i: (0, i)),
        ),
        compiler_params=pltpu.CompilerParams(
            dimension_semantics=("parallel",)),
        cost_estimate=cost,
    )(x_t, w_all, b_all)

    # (dim_out, n_pad) -> (n, dim_out)
    return out_t.T[:n]


# --------------------------------------------------------------------------
# Params / reference
# --------------------------------------------------------------------------
def init_fcnet_params(key, dim_in, width, dim_out, depth):
    """Xavier-normal weights in PyTorch (out, in) layout, zero biases
    (mirrors FcNet.Xavier_initi)."""
    def xavier(k, fan_out, fan_in):
        std = jnp.sqrt(2.0 / (fan_in + fan_out))
        return std * jax.random.normal(k, (fan_out, fan_in), jnp.float32)

    ks = jax.random.split(key, depth + 2)
    w0 = xavier(ks[0], width, dim_in)
    wh = jnp.stack([xavier(ks[1 + d], width, width) for d in range(depth)], 0)
    wl = xavier(ks[depth + 1], dim_out, width)
    return {
        "w0": w0, "b0": jnp.zeros((width, 1), jnp.float32),
        "wh": wh, "bh": jnp.zeros((depth, width, 1), jnp.float32),
        "wl": wl, "bl": jnp.zeros((dim_out, 1), jnp.float32),
    }


def fcnet_reference(x, params, depth):
    """Pure-JAX reference (PyTorch nn.Linear semantics: y = x @ W^T + b)."""
    h = x @ params["w0"].T + params["b0"][:, 0]
    for d in range(depth):
        h = jnp.tanh(h @ params["wh"][d].T + params["bh"][d, :, 0])
    return h @ params["wl"].T + params["bl"][:, 0]


# --------------------------------------------------------------------------
# Self-test
# --------------------------------------------------------------------------
if __name__ == "__main__":
    # Burgers inverse-problem style net: input (x, t), scalar output.
    dim_in, width, dim_out, depth = 2, 32, 1, 3
    n = 300  # ragged batch of collocation points (exercises padding + chunking)

    key = jax.random.PRNGKey(0)
    kx, kp = jax.random.split(key)
    x = jax.random.normal(kx, (n, dim_in), jnp.float32)
    params = init_fcnet_params(kp, dim_in, width, dim_out, depth)

    out = fcnet_forward(x, params, depth=depth)
    out = jax.block_until_ready(out)

    ref = fcnet_reference(x, params, depth)
    assert out.shape == (n, dim_out)
    assert jnp.allclose(out, ref, atol=1e-5, rtol=1e-5), "mismatch vs reference"

    print("KERNEL_OK")
</pallas_src>

<mosaic_0001>
module attributes {stable_mosaic.version = 11 : i64} {
  func.func @fcnet_kernel(%arg0: i32, %arg1: memref<2x512xf32, #tpu.memory_space<vmem>>, %arg2: memref<5x32x32xf32, #tpu.memory_space<vmem>>, %arg3: memref<5x32x1xf32, #tpu.memory_space<vmem>>, %arg4: memref<1x512xf32, #tpu.memory_space<vmem>>) attributes {dimension_semantics = [#tpu.dimension_semantics<parallel>], iteration_bounds = array<i64: 1>, scalar_prefetch = 0 : i64, scratch_operands = 0 : i64, tpu.core_type = #tpu.core_type<tc>, window_params = [{transform_indices = @transform_0, window_bounds = array<i64: 2, 512>}, {pipeline_mode = #tpu.pipeline_mode<synchronous>, transform_indices = @transform_1, window_bounds = array<i64: 5, 32, 32>}, {pipeline_mode = #tpu.pipeline_mode<synchronous>, transform_indices = @transform_2, window_bounds = array<i64: 5, 32, 1>}, {transform_indices = @transform_3, window_bounds = array<i64: 1, 512>}]} {
    %c0 = arith.constant 0 : index
    %c0_0 = arith.constant 0 : index
    %c0_1 = arith.constant 0 : index
    %0 = vector.load %arg2[%c0, %c0_0, %c0_1] : memref<5x32x32xf32, #tpu.memory_space<vmem>>, vector<1x32x2xf32>
    %1 = vector.shape_cast %0 : vector<1x32x2xf32> to vector<32x2xf32>
    %c0_2 = arith.constant 0 : index
    %c0_3 = arith.constant 0 : index
    %c0_4 = arith.constant 0 : index
    %2 = vector.load %arg3[%c0_2, %c0_3, %c0_4] : memref<5x32x1xf32, #tpu.memory_space<vmem>>, vector<1x32x1xf32>
    %3 = vector.shape_cast %2 : vector<1x32x1xf32> to vector<32x1xf32>
    %c1 = arith.constant 1 : index
    %c0_5 = arith.constant 0 : index
    %c0_6 = arith.constant 0 : index
    %4 = vector.load %arg2[%c1, %c0_5, %c0_6] : memref<5x32x32xf32, #tpu.memory_space<vmem>>, vector<1x32x32xf32>
    %5 = vector.shape_cast %4 : vector<1x32x32xf32> to vector<32x32xf32>
    %c2 = arith.constant 2 : index
    %c0_7 = arith.constant 0 : index
    %c0_8 = arith.constant 0 : index
    %6 = vector.load %arg2[%c2, %c0_7, %c0_8] : memref<5x32x32xf32, #tpu.memory_space<vmem>>, vector<1x32x32xf32>
    %7 = vector.shape_cast %6 : vector<1x32x32xf32> to vector<32x32xf32>
    %c3 = arith.constant 3 : index
    %c0_9 = arith.constant 0 : index
    %c0_10 = arith.constant 0 : index
    %8 = vector.load %arg2[%c3, %c0_9, %c0_10] : memref<5x32x32xf32, #tpu.memory_space<vmem>>, vector<1x32x32xf32>
    %9 = vector.shape_cast %8 : vector<1x32x32xf32> to vector<32x32xf32>
    %c1_11 = arith.constant 1 : index
    %c0_12 = arith.constant 0 : index
    %c0_13 = arith.constant 0 : index
    %10 = vector.load %arg3[%c1_11, %c0_12, %c0_13] : memref<5x32x1xf32, #tpu.memory_space<vmem>>, vector<1x32x1xf32>
    %11 = vector.shape_cast %10 : vector<1x32x1xf32> to vector<32x1xf32>
    %c2_14 = arith.constant 2 : index
    %c0_15 = arith.constant 0 : index
    %c0_16 = arith.constant 0 : index
    %12 = vector.load %arg3[%c2_14, %c0_15, %c0_16] : memref<5x32x1xf32, #tpu.memory_space<vmem>>, vector<1x32x1xf32>
    %13 = vector.shape_cast %12 : vector<1x32x1xf32> to vector<32x1xf32>
    %c3_17 = arith.constant 3 : index
    %c0_18 = arith.constant 0 : index
    %c0_19 = arith.constant 0 : index
    %14 = vector.load %arg3[%c3_17, %c0_18, %c0_19] : memref<5x32x1xf32, #tpu.memory_space<vmem>>, vector<1x32x1xf32>
    %15 = vector.shape_cast %14 : vector<1x32x1xf32> to vector<32x1xf32>
    %c4 = arith.constant 4 : index
    %c0_20 = arith.constant 0 : index
    %c0_21 = arith.constant 0 : index
    %16 = vector.load %arg2[%c4, %c0_20, %c0_21] : memref<5x32x32xf32, #tpu.memory_space<vmem>>, vector<1x1x32xf32>
    %17 = vector.shape_cast %16 : vector<1x1x32xf32> to vector<1x32xf32>
    %c4_22 = arith.constant 4 : index
    %c0_23 = arith.constant 0 : index
    %c0_24 = arith.constant 0 : index
    %18 = vector.load %arg3[%c4_22, %c0_23, %c0_24] : memref<5x32x1xf32, #tpu.memory_space<vmem>>, vector<1x1x1xf32>
    %19 = vector.shape_cast %18 : vector<1x1x1xf32> to vector<1x1xf32>
    %c0_25 = arith.constant 0 : index
    %c0_26 = arith.constant 0 : index
    %20 = vector.load %arg1[%c0_25, %c0_26] : memref<2x512xf32, #tpu.memory_space<vmem>>, vector<2x256xf32>
    %cst = arith.constant dense<0.000000e+00> : vector<32x256xf32>
    %21 = tpu.matmul %1, %20, %cst {dimension_numbers = #tpu.dot_dimension_numbers<[1], [0], [0], [1], [0, 0, 1, 1], [], []>} : vector<32x2xf32>, vector<2x256xf32>, vector<32x256xf32> -> vector<32x256xf32>
    %22 = vector.broadcast %3 : vector<32x1xf32> to vector<32x256xf32>
    %23 = arith.addf %21, %22 : vector<32x256xf32>
    %cst_27 = arith.constant dense<0.000000e+00> : vector<32x256xf32>
    %24 = tpu.matmul %5, %23, %cst_27 {dimension_numbers = #tpu.dot_dimension_numbers<[1], [0], [0], [1], [0, 0, 1, 1], [], []>} : vector<32x32xf32>, vector<32x256xf32>, vector<32x256xf32> -> vector<32x256xf32>
    %25 = vector.broadcast %11 : vector<32x1xf32> to vector<32x256xf32>
    %26 = arith.addf %24, %25 : vector<32x256xf32>
    %27 = math.tanh %26 : vector<32x256xf32>
    %cst_28 = arith.constant dense<0.000000e+00> : vector<32x256xf32>
    %28 = tpu.matmul %7, %27, %cst_28 {dimension_numbers = #tpu.dot_dimension_numbers<[1], [0], [0], [1], [0, 0, 1, 1], [], []>} : vector<32x32xf32>, vector<32x256xf32>, vector<32x256xf32> -> vector<32x256xf32>
    %29 = vector.broadcast %13 : vector<32x1xf32> to vector<32x256xf32>
    %30 = arith.addf %28, %29 : vector<32x256xf32>
    %31 = math.tanh %30 : vector<32x256xf32>
    %cst_29 = arith.constant dense<0.000000e+00> : vector<32x256xf32>
    %32 = tpu.matmul %9, %31, %cst_29 {dimension_numbers = #tpu.dot_dimension_numbers<[1], [0], [0], [1], [0, 0, 1, 1], [], []>} : vector<32x32xf32>, vector<32x256xf32>, vector<32x256xf32> -> vector<32x256xf32>
    %33 = vector.broadcast %15 : vector<32x1xf32> to vector<32x256xf32>
    %34 = arith.addf %32, %33 : vector<32x256xf32>
    %35 = math.tanh %34 : vector<32x256xf32>
    %cst_30 = arith.constant dense<0.000000e+00> : vector<1x256xf32>
    %36 = tpu.matmul %17, %35, %cst_30 {dimension_numbers = #tpu.dot_dimension_numbers<[1], [0], [0], [1], [0, 0, 1, 1], [], []>} : vector<1x32xf32>, vector<32x256xf32>, vector<1x256xf32> -> vector<1x256xf32>
    %37 = vector.broadcast %19 : vector<1x1xf32> to vector<1x256xf32>
    %38 = arith.addf %36, %37 : vector<1x256xf32>
    %c0_31 = arith.constant 0 : index
    %c0_32 = arith.constant 0 : index
    %39 = vector.load %arg4[%c0_31, %c0_32] : memref<1x512xf32, #tpu.memory_space<vmem>>, vector<1x256xf32>
    tpu.vector_store %arg4[%c0_31, %c0_32], %38 {strides = array<i32>} : memref<1x512xf32, #tpu.memory_space<vmem>>, vector<1x256xf32>,
    %c0_33 = arith.constant 0 : index
    %c256 = arith.constant 256 : index
    %40 = vector.load %arg1[%c0_33, %c256] : memref<2x512xf32, #tpu.memory_space<vmem>>, vector<2x256xf32>
    %cst_34 = arith.constant dense<0.000000e+00> : vector<32x256xf32>
    %41 = tpu.matmul %1, %40, %cst_34 {dimension_numbers = #tpu.dot_dimension_numbers<[1], [0], [0], [1], [0, 0, 1, 1], [], []>} : vector<32x2xf32>, vector<2x256xf32>, vector<32x256xf32> -> vector<32x256xf32>
    %42 = vector.broadcast %3 : vector<32x1xf32> to vector<32x256xf32>
    %43 = arith.addf %41, %42 : vector<32x256xf32>
    %cst_35 = arith.constant dense<0.000000e+00> : vector<32x256xf32>
    %44 = tpu.matmul %5, %43, %cst_35 {dimension_numbers = #tpu.dot_dimension_numbers<[1], [0], [0], [1], [0, 0, 1, 1], [], []>} : vector<32x32xf32>, vector<32x256xf32>, vector<32x256xf32> -> vector<32x256xf32>
    %45 = vector.broadcast %11 : vector<32x1xf32> to vector<32x256xf32>
    %46 = arith.addf %44, %45 : vector<32x256xf32>
    %47 = math.tanh %46 : vector<32x256xf32>
    %cst_36 = arith.constant dense<0.000000e+00> : vector<32x256xf32>
    %48 = tpu.matmul %7, %47, %cst_36 {dimension_numbers = #tpu.dot_dimension_numbers<[1], [0], [0], [1], [0, 0, 1, 1], [], []>} : vector<32x32xf32>, vector<32x256xf32>, vector<32x256xf32> -> vector<32x256xf32>
    %49 = vector.broadcast %13 : vector<32x1xf32> to vector<32x256xf32>
    %50 = arith.addf %48, %49 : vector<32x256xf32>
    %51 = math.tanh %50 : vector<32x256xf32>
    %cst_37 = arith.constant dense<0.000000e+00> : vector<32x256xf32>
    %52 = tpu.matmul %9, %51, %cst_37 {dimension_numbers = #tpu.dot_dimension_numbers<[1], [0], [0], [1], [0, 0, 1, 1], [], []>} : vector<32x32xf32>, vector<32x256xf32>, vector<32x256xf32> -> vector<32x256xf32>
    %53 = vector.broadcast %15 : vector<32x1xf32> to vector<32x256xf32>
    %54 = arith.addf %52, %53 : vector<32x256xf32>
    %55 = math.tanh %54 : vector<32x256xf32>
    %cst_38 = arith.constant dense<0.000000e+00> : vector<1x256xf32>
    %56 = tpu.matmul %17, %55, %cst_38 {dimension_numbers = #tpu.dot_dimension_numbers<[1], [0], [0], [1], [0, 0, 1, 1], [], []>} : vector<1x32xf32>, vector<32x256xf32>, vector<1x256xf32> -> vector<1x256xf32>
    %57 = vector.broadcast %19 : vector<1x1xf32> to vector<1x256xf32>
    %58 = arith.addf %56, %57 : vector<1x256xf32>
    %c0_39 = arith.constant 0 : index
    %c256_40 = arith.constant 256 : index
    %59 = vector.load %arg4[%c0_39, %c256_40] : memref<1x512xf32, #tpu.memory_space<vmem>>, vector<1x256xf32>
    tpu.vector_store %arg4[%c0_39, %c256_40], %58 {strides = array<i32>} : memref<1x512xf32, #tpu.memory_space<vmem>>, vector<1x256xf32>,
    return
  }
  func.func @transform_0(%arg0: i32) -> (i32, i32) {
    %c0_i32 = arith.constant 0 : i32
    %c0_i32_0 = arith.constant 0 : i32
    return %c0_i32, %arg0 : i32, i32
  }
  func.func @transform_1(%arg0: i32) -> (i32, i32, i32) {
    %c0_i32 = arith.constant 0 : i32
    %c0_i32_0 = arith.constant 0 : i32
    %c0_i32_1 = arith.constant 0 : i32
    %c0_i32_2 = arith.constant 0 : i32
    return %c0_i32, %c0_i32_0, %c0_i32_1 : i32, i32, i32
  }
  func.func @transform_2(%arg0: i32) -> (i32, i32, i32) {
    %c0_i32 = arith.constant 0 : i32
    %c0_i32_0 = arith.constant 0 : i32
    %c0_i32_1 = arith.constant 0 : i32
    %c0_i32_2 = arith.constant 0 : i32
    return %c0_i32, %c0_i32_0, %c0_i32_1 : i32, i32, i32
  }
  func.func @transform_3(%arg0: i32) -> (i32, i32) {
    %c0_i32 = arith.constant 0 : i32
    %c0_i32_0 = arith.constant 0 : i32
    return %c0_i32, %arg0 : i32, i32
  }
}

</mosaic_0001>

<llo_original>
// kernel: tpu_custom_call.1
$region0: #{tpu_custom_call.1}
  #allocation0 [shape = 'u32[]', space=smem, size = 0x4, offset = 0x4, fixed_abs, tag = 'smem constant byte address 0x4 - core index']
  #allocation1 [shape = 'u32[72,128]{1,0:T(1,128)}', space=vmem, size = 0x9000, scoped, tag = 'internal scratch']
  %s0 = inlined_call_operand.hbm [shape: f32[2,512], index: 0, kind: input, shape index: {}]
  %s1 = inlined_call_operand.vmem [shape: f32[5,32,32], index: 1, kind: input, shape index: {}]
  %s2 = inlined_call_operand.vmem [shape: f32[5,32,1], index: 2, kind: input, shape index: {}]
  %s3 = inlined_call_operand.hbm [shape: f32[1,512], index: 3, kind: output, shape index: {}]
  %s4 = sld [smem:[#allocation0]]
  $region26: #{tpu_custom_call.1} parent=0
    _
  %s6 = ssub.s32 1, %s4
  %s7 = scalar_select 0, %s6, %s4
  $region1: #{tpu_custom_call.1} parent=0
    #allocation2 [shape = 'u8[4096]{0}', space=vmem, size = 0x1000, scoped, tag = 'input window, operand 0, single buffered']
    #allocation3 [shape = 's32[1]{0}', space=sflag, size = 0x4, scoped, tag = 'scoped memory for tpu_custom_call.1']
    #allocation4 [shape = 's32[1]{0}', space=sflag, size = 0x4, scoped, tag = 'scoped memory for tpu_custom_call.1']
    #allocation5 [shape = 'u8[2048]{0}', space=vmem, size = 0x800, scoped, tag = 'output window, operand 0, single buffered']
    %8 = vsyncpa [#allocation3], 0
    %9 = vsyncpa [#allocation4], 0
    // Predicated region
    $region2: #{tpu_custom_call.1} parent=1 // pred_check
      _
    $region3: #{tpu_custom_call.1} parent=1 // pred_check_branch
      %11 = sbr.rel (0) target = $region5
    $region4: #{tpu_custom_call.1} parent=1 // pred_region
      %13 = vsyncadd [#allocation3], 0
      %s15 = sshll.u32 %s0, 4
      %s16 = int_to_ptr.hbm [resolvable:$true] %s15
      %s17 = sshll.u32 [#allocation2], 4
      %s18 = int_to_ptr.vmem [resolvable:$true] %s17
      %20 = dma.hbm_to_vmem [thread:$0]  %s16, 128, %s18, [#allocation3]
    $region5: #{tpu_custom_call.1} parent=1 // pred_fallthru
      _
    // Predicated region
    $region6: #{tpu_custom_call.1} parent=1 // pred_check
      _
    $region7: #{tpu_custom_call.1} parent=1 // pred_check_branch
      %22 = sbr.rel (0) target = $region9
    $region8: #{tpu_custom_call.1} parent=1 // pred_region
      _
    $region9: #{tpu_custom_call.1} parent=1 // pred_fallthru
      _
    // Predicated region
    $region10: #{tpu_custom_call.1} parent=1 // pred_check
      _
    $region11: #{tpu_custom_call.1} parent=1 // pred_check_branch
      %24 = sbr.rel (0) target = $region13
    $region12: #{tpu_custom_call.1} parent=1 // pred_region
      _
    $region13: #{tpu_custom_call.1} parent=1 // pred_fallthru
      _
    // Predicated region
    $region14: #{tpu_custom_call.1} parent=1 // pred_check
      _
    $region15: #{tpu_custom_call.1} parent=1 // pred_check_branch
      %26 = sbr.rel (0) target = $region17
    $region16: #{tpu_custom_call.1} parent=1 // pred_region
      %28 = dma.done [#allocation3], 128
    $region17: #{tpu_custom_call.1} parent=1 // pred_fallthru
      _
    %v29 = vld [vmem:[%s1] sm:$0xff]
    %v30 = vld [vmem:[%s1 + $0x8] sm:$0xff]
    %v31 = vld [vmem:[%s1 + $0x10] sm:$0xff]
    %v32 = vld [vmem:[%s1 + $0x18] sm:$0xff]
    %v33 = vld [vmem:[%s2] sm:$0xff]
    %v34 = vld [vmem:[%s2 + $0x8] sm:$0xff]
    %v35 = vld [vmem:[%s2 + $0x10] sm:$0xff]
    %v36 = vld [vmem:[%s2 + $0x18] sm:$0xff]
    %s37 = scalar_lea.vmem %s1, 32
    %v38 = vld [vmem:[%s37] sm:$0xff]
    %v39 = vld [vmem:[%s37 + $0x8] sm:$0xff]
    %v40 = vld [vmem:[%s37 + $0x10] sm:$0xff]
    %v41 = vld [vmem:[%s37 + $0x18] sm:$0xff]
    %s42 = scalar_lea.vmem %s1, 64
    %v43 = vld [vmem:[%s42] sm:$0xff]
    %v44 = vld [vmem:[%s42 + $0x8] sm:$0xff]
    %v45 = vld [vmem:[%s42 + $0x10] sm:$0xff]
    %v46 = vld [vmem:[%s42 + $0x18] sm:$0xff]
    %s47 = scalar_lea.vmem %s1, 96
    %v48 = vld [vmem:[%s47] sm:$0xff]
    %v49 = vld [vmem:[%s47 + $0x8] sm:$0xff]
    %v50 = vld [vmem:[%s47 + $0x10] sm:$0xff]
    %v51 = vld [vmem:[%s47 + $0x18] sm:$0xff]
    %s52 = scalar_lea.vmem %s2, 32
    %v53 = vld [vmem:[%s52] sm:$0xff]
    %v54 = vld [vmem:[%s52 + $0x8] sm:$0xff]
    %v55 = vld [vmem:[%s52 + $0x10] sm:$0xff]
    %v56 = vld [vmem:[%s52 + $0x18] sm:$0xff]
    %s57 = scalar_lea.vmem %s2, 64
    %v58 = vld [vmem:[%s57] sm:$0xff]
    %v59 = vld [vmem:[%s57 + $0x8] sm:$0xff]
    %v60 = vld [vmem:[%s57 + $0x10] sm:$0xff]
    %v61 = vld [vmem:[%s57 + $0x18] sm:$0xff]
    %s62 = scalar_lea.vmem %s2, 96
    %v63 = vld [vmem:[%s62] sm:$0xff]
    %v64 = vld [vmem:[%s62 + $0x8] sm:$0xff]
    %v65 = vld [vmem:[%s62 + $0x10] sm:$0xff]
    %v66 = vld [vmem:[%s62 + $0x18] sm:$0xff]
    %s67 = scalar_lea.vmem %s1, 128
    %v68 = vld [vmem:[%s67] sm:$0x1]
    %s69 = scalar_lea.vmem %s2, 128
    %v70 = vld [vmem:[%s69] sm:$0x1]
    %v71 = vld [vmem:[#allocation2] sm:$0xf]
    %73 = vset.pattern.permute.xlu0 0
    %74 = vperm.xlu0 %73, %v33
    %v75 = vpop.permute.xlu0 %74
    %78 = vset.pattern.permute.xlu0 0
    %79 = vperm.xlu0 %78, %v34
    %v80 = vpop.permute.xlu0 %79
    %83 = vset.pattern.permute.xlu0 0
    %84 = vperm.xlu0 %83, %v35
    %v85 = vpop.permute.xlu0 %84
    %88 = vset.pattern.permute.xlu0 0
    %89 = vperm.xlu0 %88, %v36
    %v90 = vpop.permute.xlu0 %89
    %93 = vst [vmem:[#allocation1] ss:$4 sm:$0xff] %v71
    %v94 = vld.sshfl [vmem:[#allocation1] sm:$0xff pattern:$0x73625140]
    %v95 = vld.sshfl [vmem:[#allocation1 + $0x8] sm:$0xff pattern:$0x73625140]
    %vm96 = vcmask 15360
    %v98 = vsel %vm96, %v29, 0
    %v101 = vsel %vm96, %v30, 0
    %v104 = vsel %vm96, %v31, 0
    %v107 = vsel %vm96, %v32, 0
    %vm109 = vcmask 1041408
    %v110 = vsel %vm109, %v94, 0
    %v112 = vsel %vm109, %v95, 0
    %114 = vmatpush.msra.mxu0 0.0
    %115 = vmatpush.msra.mxu0 0.0
    %116 = vmatpush.msra.mxu0 0.0
    %117 = vmatpush.msra.mxu0 0.0
    %118 = vmatpush.msra.mxu0 0.0
    %119 = vmatpush.msra.mxu0 0.0
    %120 = vmatpush.msra.mxu0 0.0
    %121 = vmatpush.msra.mxu0 0.0
    %122 = vmatpush.msra.mxu0 0.0
    %123 = vmatpush.msra.mxu0 0.0
    %124 = vmatpush.msra.mxu0 0.0
    %125 = vmatpush.msra.mxu0 0.0
    %126 = vmatpush.msra.mxu0 0.0
    %127 = vmatpush.msra.mxu0 0.0
    %128 = vmatpush.msra.mxu0 0.0
    %129 = vmatpush.msra.mxu0 %v110
    %130 = vmatmul.f32.gmra.mxu0 %v98
    %v131 = vpop.f32.mrf.mxu0
    %v132 = vadd.f32 %v75, %v131
    %133 = vmatmul.f32.gmra.mxu0 %v101
    %v134 = vpop.f32.mrf.mxu0
    %v135 = vadd.f32 %v80, %v134
    %136 = vmatmul.f32.gmra.mxu0 %v104
    %v137 = vpop.f32.mrf.mxu0
    %v138 = vadd.f32 %v85, %v137
    %139 = vmatmul.f32.gmra.mxu0 %v107
    %v140 = vpop.f32.mrf.mxu0
    %v141 = vadd.f32 %v90, %v140
    %142 = vdwg.mxu0
    %143 = vmatpush.msra.mxu0 0.0
    %144 = vmatpush.msra.mxu0 0.0
    %145 = vmatpush.msra.mxu0 0.0
    %146 = vmatpush.msra.mxu0 0.0
    %147 = vmatpush.msra.mxu0 0.0
    %148 = vmatpush.msra.mxu0 0.0
    %149 = vmatpush.msra.mxu0 0.0
    %150 = vmatpush.msra.mxu0 0.0
    %151 = vmatpush.msra.mxu0 0.0
    %152 = vmatpush.msra.mxu0 0.0
    %153 = vmatpush.msra.mxu0 0.0
    %154 = vmatpush.msra.mxu0 0.0
    %155 = vmatpush.msra.mxu0 0.0
    %156 = vmatpush.msra.mxu0 0.0
    %157 = vmatpush.msra.mxu0 0.0
    %158 = vmatpush.msra.mxu0 %v112
    %159 = vmatmul.f32.gmra.mxu0 %v98
    %v160 = vpop.f32.mrf.mxu0
    %v161 = vadd.f32 %v75, %v160
    %162 = vmatmul.f32.gmra.mxu0 %v101
    %v163 = vpop.f32.mrf.mxu0
    %v164 = vadd.f32 %v80, %v163
    %165 = vmatmul.f32.gmra.mxu0 %v104
    %v166 = vpop.f32.mrf.mxu0
    %v167 = vadd.f32 %v85, %v166
    %168 = vmatmul.f32.gmra.mxu0 %v107
    %v169 = vpop.f32.mrf.mxu0
    %v170 = vadd.f32 %v90, %v169
    %171 = vdwg.mxu0
    %173 = vset.pattern.permute.xlu0 0
    %174 = vperm.xlu0 %173, %v53
    %v175 = vpop.permute.xlu0 %174
    %178 = vset.pattern.permute.xlu0 0
    %179 = vperm.xlu0 %178, %v54
    %v180 = vpop.permute.xlu0 %179
    %183 = vset.pattern.permute.xlu0 0
    %184 = vperm.xlu0 %183, %v55
    %v185 = vpop.permute.xlu0 %184
    %188 = vset.pattern.permute.xlu0 0
    %189 = vperm.xlu0 %188, %v56
    %v190 = vpop.permute.xlu0 %189
    %vm192 = vcmask 261120
    %v194 = vsel %vm192, %v38, 0
    %v197 = vsel %vm192, %v39, 0
    %v200 = vsel %vm192, %v40, 0
    %v203 = vsel %vm192, %v41, 0
    %205 = vmatpush.msra.mxu0 0.0
    %206 = vmatpush.msra.mxu0 0.0
    %207 = vmatpush.msra.mxu0 0.0
    %208 = vmatpush.msra.mxu0 0.0
    %209 = vmatpush.msra.mxu0 0.0
    %210 = vmatpush.msra.mxu0 0.0
    %211 = vmatpush.msra.mxu0 0.0
    %212 = vmatpush.msra.mxu0 0.0
    %213 = vmatpush.msra.mxu0 0.0
    %214 = vmatpush.msra.mxu0 0.0
    %215 = vmatpush.msra.mxu0 0.0
    %216 = vmatpush.msra.mxu0 0.0
    %217 = vmatpush.msra.mxu0 %v141
    %218 = vmatpush.msra.mxu0 %v138
    %219 = vmatpush.msra.mxu0 %v135
    %220 = vmatpush.msra.mxu0 %v132
    %221 = vmatmul.f32.gmra.mxu0 %v194
    %v222 = vpop.f32.mrf.mxu0
    %v223 = vadd.f32 %v175, %v222
    %224 = vmatmul.f32.gmra.mxu0 %v197
    %v225 = vpop.f32.mrf.mxu0
    %v226 = vadd.f32 %v180, %v225
    %227 = vmatmul.f32.gmra.mxu0 %v200
    %v228 = vpop.f32.mrf.mxu0
    %v229 = vadd.f32 %v185, %v228
    %230 = vmatmul.f32.gmra.mxu0 %v203
    %v231 = vpop.f32.mrf.mxu0
    %v232 = vadd.f32 %v190, %v231
    %233 = vdwg.mxu0
    %234 = vmatpush.msra.mxu0 0.0
    %235 = vmatpush.msra.mxu0 0.0
    %236 = vmatpush.msra.mxu0 0.0
    %237 = vmatpush.msra.mxu0 0.0
    %238 = vmatpush.msra.mxu0 0.0
    %239 = vmatpush.msra.mxu0 0.0
    %240 = vmatpush.msra.mxu0 0.0
    %241 = vmatpush.msra.mxu0 0.0
    %242 = vmatpush.msra.mxu0 0.0
    %243 = vmatpush.msra.mxu0 0.0
    %244 = vmatpush.msra.mxu0 0.0
    %245 = vmatpush.msra.mxu0 0.0
    %246 = vmatpush.msra.mxu0 %v170
    %247 = vmatpush.msra.mxu0 %v167
    %248 = vmatpush.msra.mxu0 %v164
    %249 = vmatpush.msra.mxu0 %v161
    %250 = vmatmul.f32.gmra.mxu0 %v194
    %v251 = vpop.f32.mrf.mxu0
    %v252 = vadd.f32 %v175, %v251
    %253 = vmatmul.f32.gmra.mxu0 %v197
    %v254 = vpop.f32.mrf.mxu0
    %v255 = vadd.f32 %v180, %v254
    %256 = vmatmul.f32.gmra.mxu0 %v200
    %v257 = vpop.f32.mrf.mxu0
    %v258 = vadd.f32 %v185, %v257
    %259 = vmatmul.f32.gmra.mxu0 %v203
    %v260 = vpop.f32.mrf.mxu0
    %v261 = vadd.f32 %v190, %v260
    %262 = vdwg.mxu0
    %v263 = vtanh.pop %v223
    %v264 = vtanh.pop %v252
    %v265 = vtanh.pop %v226
    %v266 = vtanh.pop %v255
    %v267 = vtanh.pop %v229
    %v268 = vtanh.pop %v258
    %v269 = vtanh.pop %v232
    %v270 = vtanh.pop %v261
    %272 = vset.pattern.permute.xlu0 0
    %273 = vperm.xlu0 %272, %v58
    %v274 = vpop.permute.xlu0 %273
    %277 = vset.pattern.permute.xlu0 0
    %278 = vperm.xlu0 %277, %v59
    %v279 = vpop.permute.xlu0 %278
    %282 = vset.pattern.permute.xlu0 0
    %283 = vperm.xlu0 %282, %v60
    %v284 = vpop.permute.xlu0 %283
    %287 = vset.pattern.permute.xlu0 0
    %288 = vperm.xlu0 %287, %v61
    %v289 = vpop.permute.xlu0 %288
    %v292 = vsel %vm192, %v43, 0
    %v295 = vsel %vm192, %v44, 0
    %v298 = vsel %vm192, %v45, 0
    %v301 = vsel %vm192, %v46, 0
    %303 = vmatpush.msra.mxu0 0.0
    %304 = vmatpush.msra.mxu0 0.0
    %305 = vmatpush.msra.mxu0 0.0
    %306 = vmatpush.msra.mxu0 0.0
    %307 = vmatpush.msra.mxu0 0.0
    %308 = vmatpush.msra.mxu0 0.0
    %309 = vmatpush.msra.mxu0 0.0
    %310 = vmatpush.msra.mxu0 0.0
    %311 = vmatpush.msra.mxu0 0.0
    %312 = vmatpush.msra.mxu0 0.0
    %313 = vmatpush.msra.mxu0 0.0
    %314 = vmatpush.msra.mxu0 0.0
    %315 = vmatpush.msra.mxu0 %v269
    %316 = vmatpush.msra.mxu0 %v267
    %317 = vmatpush.msra.mxu0 %v265
    %318 = vmatpush.msra.mxu0 %v263
    %319 = vmatmul.f32.gmra.mxu0 %v292
    %v320 = vpop.f32.mrf.mxu0
    %v321 = vadd.f32 %v274, %v320
    %322 = vmatmul.f32.gmra.mxu0 %v295
    %v323 = vpop.f32.mrf.mxu0
    %v324 = vadd.f32 %v279, %v323
    %325 = vmatmul.f32.gmra.mxu0 %v298
    %v326 = vpop.f32.mrf.mxu0
    %v327 = vadd.f32 %v284, %v326
    %328 = vmatmul.f32.gmra.mxu0 %v301
    %v329 = vpop.f32.mrf.mxu0
    %v330 = vadd.f32 %v289, %v329
    %331 = vdwg.mxu0
    %332 = vmatpush.msra.mxu0 0.0
    %333 = vmatpush.msra.mxu0 0.0
    %334 = vmatpush.msra.mxu0 0.0
    %335 = vmatpush.msra.mxu0 0.0
    %336 = vmatpush.msra.mxu0 0.0
    %337 = vmatpush.msra.mxu0 0.0
    %338 = vmatpush.msra.mxu0 0.0
    %339 = vmatpush.msra.mxu0 0.0
    %340 = vmatpush.msra.mxu0 0.0
    %341 = vmatpush.msra.mxu0 0.0
    %342 = vmatpush.msra.mxu0 0.0
    %343 = vmatpush.msra.mxu0 0.0
    %344 = vmatpush.msra.mxu0 %v270
    %345 = vmatpush.msra.mxu0 %v268
    %346 = vmatpush.msra.mxu0 %v266
    %347 = vmatpush.msra.mxu0 %v264
    %348 = vmatmul.f32.gmra.mxu0 %v292
    %v349 = vpop.f32.mrf.mxu0
    %v350 = vadd.f32 %v274, %v349
    %351 = vmatmul.f32.gmra.mxu0 %v295
    %v352 = vpop.f32.mrf.mxu0
    %v353 = vadd.f32 %v279, %v352
    %354 = vmatmul.f32.gmra.mxu0 %v298
    %v355 = vpop.f32.mrf.mxu0
    %v356 = vadd.f32 %v284, %v355
    %357 = vmatmul.f32.gmra.mxu0 %v301
    %v358 = vpop.f32.mrf.mxu0
    %v359 = vadd.f32 %v289, %v358
    %360 = vdwg.mxu0
    %v361 = vtanh.pop %v321
    %v362 = vtanh.pop %v350
    %v363 = vtanh.pop %v324
    %v364 = vtanh.pop %v353
    %v365 = vtanh.pop %v327
    %v366 = vtanh.pop %v356
    %v367 = vtanh.pop %v330
    %v368 = vtanh.pop %v359
    %370 = vset.pattern.permute.xlu0 0
    %371 = vperm.xlu0 %370, %v63
    %v372 = vpop.permute.xlu0 %371
    %375 = vset.pattern.permute.xlu0 0
    %376 = vperm.xlu0 %375, %v64
    %v377 = vpop.permute.xlu0 %376
    %380 = vset.pattern.permute.xlu0 0
    %381 = vperm.xlu0 %380, %v65
    %v382 = vpop.permute.xlu0 %381
    %385 = vset.pattern.permute.xlu0 0
    %386 = vperm.xlu0 %385, %v66
    %v387 = vpop.permute.xlu0 %386
    %v390 = vsel %vm192, %v48, 0
    %v393 = vsel %vm192, %v49, 0
    %v396 = vsel %vm192, %v50, 0
    %v399 = vsel %vm192, %v51, 0
    %401 = vmatpush.msra.mxu0 0.0
    %402 = vmatpush.msra.mxu0 0.0
    %403 = vmatpush.msra.mxu0 0.0
    %404 = vmatpush.msra.mxu0 0.0
    %405 = vmatpush.msra.mxu0 0.0
    %406 = vmatpush.msra.mxu0 0.0
    %407 = vmatpush.msra.mxu0 0.0
    %408 = vmatpush.msra.mxu0 0.0
    %409 = vmatpush.msra.mxu0 0.0
    %410 = vmatpush.msra.mxu0 0.0
    %411 = vmatpush.msra.mxu0 0.0
    %412 = vmatpush.msra.mxu0 0.0
    %413 = vmatpush.msra.mxu0 %v367
    %414 = vmatpush.msra.mxu0 %v365
    %415 = vmatpush.msra.mxu0 %v363
    %416 = vmatpush.msra.mxu0 %v361
    %417 = vmatmul.f32.gmra.mxu0 %v390
    %v418 = vpop.f32.mrf.mxu0
    %v419 = vadd.f32 %v372, %v418
    %420 = vmatmul.f32.gmra.mxu0 %v393
    %v421 = vpop.f32.mrf.mxu0
    %v422 = vadd.f32 %v377, %v421
    %423 = vmatmul.f32.gmra.mxu0 %v396
    %v424 = vpop.f32.mrf.mxu0
    %v425 = vadd.f32 %v382, %v424
    %426 = vmatmul.f32.gmra.mxu0 %v399
    %v427 = vpop.f32.mrf.mxu0
    %v428 = vadd.f32 %v387, %v427
    %429 = vdwg.mxu0
    %430 = vmatpush.msra.mxu0 0.0
    %431 = vmatpush.msra.mxu0 0.0
    %432 = vmatpush.msra.mxu0 0.0
    %433 = vmatpush.msra.mxu0 0.0
    %434 = vmatpush.msra.mxu0 0.0
    %435 = vmatpush.msra.mxu0 0.0
    %436 = vmatpush.msra.mxu0 0.0
    %437 = vmatpush.msra.mxu0 0.0
    %438 = vmatpush.msra.mxu0 0.0
    %439 = vmatpush.msra.mxu0 0.0
    %440 = vmatpush.msra.mxu0 0.0
    %441 = vmatpush.msra.mxu0 0.0
    %442 = vmatpush.msra.mxu0 %v368
    %443 = vmatpush.msra.mxu0 %v366
    %444 = vmatpush.msra.mxu0 %v364
    %445 = vmatpush.msra.mxu0 %v362
    %446 = vmatmul.f32.gmra.mxu0 %v390
    %v447 = vpop.f32.mrf.mxu0
    %v448 = vadd.f32 %v372, %v447
    %449 = vmatmul.f32.gmra.mxu0 %v393
    %v450 = vpop.f32.mrf.mxu0
    %v451 = vadd.f32 %v377, %v450
    %452 = vmatmul.f32.gmra.mxu0 %v396
    %v453 = vpop.f32.mrf.mxu0
    %v454 = vadd.f32 %v382, %v453
    %455 = vmatmul.f32.gmra.mxu0 %v399
    %v456 = vpop.f32.mrf.mxu0
    %v457 = vadd.f32 %v387, %v456
    %458 = vdwg.mxu0
    %v459 = vtanh.pop %v419
    %v460 = vtanh.pop %v448
    %v461 = vtanh.pop %v422
    %v462 = vtanh.pop %v451
    %v463 = vtanh.pop %v425
    %v464 = vtanh.pop %v454
    %v465 = vtanh.pop %v428
    %v466 = vtanh.pop %v457
    %468 = vset.pattern.permute.xlu0 0
    %469 = vperm.xlu0 %468, %v70
    %v470 = vpop.permute.xlu0 %469
    %v473 = vsel %vm192, %v68, 0
    %475 = vmatpush.msra.mxu0 0.0
    %476 = vmatpush.msra.mxu0 0.0
    %477 = vmatpush.msra.mxu0 0.0
    %478 = vmatpush.msra.mxu0 0.0
    %479 = vmatpush.msra.mxu0 0.0
    %480 = vmatpush.msra.mxu0 0.0
    %481 = vmatpush.msra.mxu0 0.0
    %482 = vmatpush.msra.mxu0 0.0
    %483 = vmatpush.msra.mxu0 0.0
    %484 = vmatpush.msra.mxu0 0.0
    %485 = vmatpush.msra.mxu0 0.0
    %486 = vmatpush.msra.mxu0 0.0
    %487 = vmatpush.msra.mxu0 %v465
    %488 = vmatpush.msra.mxu0 %v463
    %489 = vmatpush.msra.mxu0 %v461
    %490 = vmatpush.msra.mxu0 %v459
    %491 = vmatmul.f32.gmra.mxu0 %v473
    %v492 = vpop.f32.mrf.mxu0
    %v493 = vadd.f32 %v470, %v492
    %494 = vdwg.mxu0
    %495 = vmatpush.msra.mxu0 0.0
    %496 = vmatpush.msra.mxu0 0.0
    %497 = vmatpush.msra.mxu0 0.0
    %498 = vmatpush.msra.mxu0 0.0
    %499 = vmatpush.msra.mxu0 0.0
    %500 = vmatpush.msra.mxu0 0.0
    %501 = vmatpush.msra.mxu0 0.0
    %502 = vmatpush.msra.mxu0 0.0
    %503 = vmatpush.msra.mxu0 0.0
    %504 = vmatpush.msra.mxu0 0.0
    %505 = vmatpush.msra.mxu0 0.0
    %506 = vmatpush.msra.mxu0 0.0
    %507 = vmatpush.msra.mxu0 %v466
    %508 = vmatpush.msra.mxu0 %v464
    %509 = vmatpush.msra.mxu0 %v462
    %510 = vmatpush.msra.mxu0 %v460
    %511 = vmatmul.f32.gmra.mxu0 %v473
    %v512 = vpop.f32.mrf.mxu0
    %v513 = vadd.f32 %v470, %v512
    %514 = vdwg.mxu0
    %v517 = vrot.slane %v513, 7
    %vm518 = vcmask 1040384
    %v519 = vsel %vm518, %v493, %v517
    %v521 = vlaneseq
    %vm522 = vcmp.ge.s32.totalorder %v521, 0
    %vm523 = vcmp.lt.s32.totalorder %v521, 256
    %vm524 = vmand %vm522, %vm523
    %525 = vst.msk [vmem:[#allocation5] sm:$0x3] %vm524, %v519
    %v526 = vld [vmem:[#allocation2 + $0x4] sm:$0xf]
    %528 = vst [vmem:[#allocation1] ss:$4 sm:$0xff] %v526
    %v529 = vld.sshfl [vmem:[#allocation1] sm:$0xff pattern:$0x73625140]
    %v530 = vld.sshfl [vmem:[#allocation1 + $0x8] sm:$0xff pattern:$0x73625140]
    %v531 = vsel %vm109, %v529, 0
    %v533 = vsel %vm109, %v530, 0
    %535 = vmatpush.msra.mxu0 0.0
    %536 = vmatpush.msra.mxu0 0.0
    %537 = vmatpush.msra.mxu0 0.0
    %538 = vmatpush.msra.mxu0 0.0
    %539 = vmatpush.msra.mxu0 0.0
    %540 = vmatpush.msra.mxu0 0.0
    %541 = vmatpush.msra.mxu0 0.0
    %542 = vmatpush.msra.mxu0 0.0
    %543 = vmatpush.msra.mxu0 0.0
    %544 = vmatpush.msra.mxu0 0.0
    %545 = vmatpush.msra.mxu0 0.0
    %546 = vmatpush.msra.mxu0 0.0
    %547 = vmatpush.msra.mxu0 0.0
    %548 = vmatpush.msra.mxu0 0.0
    %549 = vmatpush.msra.mxu0 0.0
    %550 = vmatpush.msra.mxu0 %v531
    %551 = vmatmul.f32.gmra.mxu0 %v98
    %v552 = vpop.f32.mrf.mxu0
    %v553 = vadd.f32 %v75, %v552
    %554 = vmatmul.f32.gmra.mxu0 %v101
    %v555 = vpop.f32.mrf.mxu0
    %v556 = vadd.f32 %v80, %v555
    %557 = vmatmul.f32.gmra.mxu0 %v104
    %v558 = vpop.f32.mrf.mxu0
    %v559 = vadd.f32 %v85, %v558
    %560 = vmatmul.f32.gmra.mxu0 %v107
    %v561 = vpop.f32.mrf.mxu0
    %v562 = vadd.f32 %v90, %v561
    %563 = vdwg.mxu0
    %564 = vmatpush.msra.mxu0 0.0
    %565 = vmatpush.msra.mxu0 0.0
    %566 = vmatpush.msra.mxu0 0.0
    %567 = vmatpush.msra.mxu0 0.0
    %568 = vmatpush.msra.mxu0 0.0
    %569 = vmatpush.msra.mxu0 0.0
    %570 = vmatpush.msra.mxu0 0.0
    %571 = vmatpush.msra.mxu0 0.0
    %572 = vmatpush.msra.mxu0 0.0
    %573 = vmatpush.msra.mxu0 0.0
    %574 = vmatpush.msra.mxu0 0.0
    %575 = vmatpush.msra.mxu0 0.0
    %576 = vmatpush.msra.mxu0 0.0
    %577 = vmatpush.msra.mxu0 0.0
    %578 = vmatpush.msra.mxu0 0.0
    %579 = vmatpush.msra.mxu0 %v533
    %580 = vmatmul.f32.gmra.mxu0 %v98
    %v581 = vpop.f32.mrf.mxu0
    %v582 = vadd.f32 %v75, %v581
    %583 = vmatmul.f32.gmra.mxu0 %v101
    %v584 = vpop.f32.mrf.mxu0
    %v585 = vadd.f32 %v80, %v584
    %586 = vmatmul.f32.gmra.mxu0 %v104
    %v587 = vpop.f32.mrf.mxu0
    %v588 = vadd.f32 %v85, %v587
    %589 = vmatmul.f32.gmra.mxu0 %v107
    %v590 = vpop.f32.mrf.mxu0
    %v591 = vadd.f32 %v90, %v590
    %592 = vdwg.mxu0
    %593 = vmatpush.msra.mxu0 0.0
    %594 = vmatpush.msra.mxu0 0.0
    %595 = vmatpush.msra.mxu0 0.0
    %596 = vmatpush.msra.mxu0 0.0
    %597 = vmatpush.msra.mxu0 0.0
    %598 = vmatpush.msra.mxu0 0.0
    %599 = vmatpush.msra.mxu0 0.0
    %600 = vmatpush.msra.mxu0 0.0
    %601 = vmatpush.msra.mxu0 0.0
    %602 = vmatpush.msra.mxu0 0.0
    %603 = vmatpush.msra.mxu0 0.0
    %604 = vmatpush.msra.mxu0 0.0
    %605 = vmatpush.msra.mxu0 %v562
    %606 = vmatpush.msra.mxu0 %v559
    %607 = vmatpush.msra.mxu0 %v556
    %608 = vmatpush.msra.mxu0 %v553
    %609 = vmatmul.f32.gmra.mxu0 %v194
    %v610 = vpop.f32.mrf.mxu0
    %v611 = vadd.f32 %v175, %v610
    %612 = vmatmul.f32.gmra.mxu0 %v197
    %v613 = vpop.f32.mrf.mxu0
    %v614 = vadd.f32 %v180, %v613
    %615 = vmatmul.f32.gmra.mxu0 %v200
    %v616 = vpop.f32.mrf.mxu0
    %v617 = vadd.f32 %v185, %v616
    %618 = vmatmul.f32.gmra.mxu0 %v203
    %v619 = vpop.f32.mrf.mxu0
    %v620 = vadd.f32 %v190, %v619
    %621 = vdwg.mxu0
    %622 = vmatpush.msra.mxu0 0.0
    %623 = vmatpush.msra.mxu0 0.0
    %624 = vmatpush.msra.mxu0 0.0
    %625 = vmatpush.msra.mxu0 0.0
    %626 = vmatpush.msra.mxu0 0.0
    %627 = vmatpush.msra.mxu0 0.0
    %628 = vmatpush.msra.mxu0 0.0
    %629 = vmatpush.msra.mxu0 0.0
    %630 = vmatpush.msra.mxu0 0.0
    %631 = vmatpush.msra.mxu0 0.0
    %632 = vmatpush.msra.mxu0 0.0
    %633 = vmatpush.msra.mxu0 0.0
    %634 = vmatpush.msra.mxu0 %v591
    %635 = vmatpush.msra.mxu0 %v588
    %636 = vmatpush.msra.mxu0 %v585
    %637 = vmatpush.msra.mxu0 %v582
    %638 = vmatmul.f32.gmra.mxu0 %v194
    %v639 = vpop.f32.mrf.mxu0
    %v640 = vadd.f32 %v175, %v639
    %641 = vmatmul.f32.gmra.mxu0 %v197
    %v642 = vpop.f32.mrf.mxu0
    %v643 = vadd.f32 %v180, %v642
    %644 = vmatmul.f32.gmra.mxu0 %v200
    %v645 = vpop.f32.mrf.mxu0
    %v646 = vadd.f32 %v185, %v645
    %647 = vmatmul.f32.gmra.mxu0 %v203
    %v648 = vpop.f32.mrf.mxu0
    %v649 = vadd.f32 %v190, %v648
    %650 = vdwg.mxu0
    %v651 = vtanh.pop %v611
    %v652 = vtanh.pop %v640
    %v653 = vtanh.pop %v614
    %v654 = vtanh.pop %v643
    %v655 = vtanh.pop %v617
    %v656 = vtanh.pop %v646
    %v657 = vtanh.pop %v620
    %v658 = vtanh.pop %v649
    %659 = vmatpush.msra.mxu0 0.0
    %660 = vmatpush.msra.mxu0 0.0
    %661 = vmatpush.msra.mxu0 0.0
    %662 = vmatpush.msra.mxu0 0.0
    %663 = vmatpush.msra.mxu0 0.0
    %664 = vmatpush.msra.mxu0 0.0
    %665 = vmatpush.msra.mxu0 0.0
    %666 = vmatpush.msra.mxu0 0.0
    %667 = vmatpush.msra.mxu0 0.0
    %668 = vmatpush.msra.mxu0 0.0
    %669 = vmatpush.msra.mxu0 0.0
    %670 = vmatpush.msra.mxu0 0.0
    %671 = vmatpush.msra.mxu0 %v657
    %672 = vmatpush.msra.mxu0 %v655
    %673 = vmatpush.msra.mxu0 %v653
    %674 = vmatpush.msra.mxu0 %v651
    %675 = vmatmul.f32.gmra.mxu0 %v292
    %v676 = vpop.f32.mrf.mxu0
    %v677 = vadd.f32 %v274, %v676
    %678 = vmatmul.f32.gmra.mxu0 %v295
    %v679 = vpop.f32.mrf.mxu0
    %v680 = vadd.f32 %v279, %v679
    %681 = vmatmul.f32.gmra.mxu0 %v298
    %v682 = vpop.f32.mrf.mxu0
    %v683 = vadd.f32 %v284, %v682
    %684 = vmatmul.f32.gmra.mxu0 %v301
    %v685 = vpop.f32.mrf.mxu0
    %v686 = vadd.f32 %v289, %v685
    %687 = vdwg.mxu0
    %688 = vmatpush.msra.mxu0 0.0
    %689 = vmatpush.msra.mxu0 0.0
    %690 = vmatpush.msra.mxu0 0.0
    %691 = vmatpush.msra.mxu0 0.0
    %692 = vmatpush.msra.mxu0 0.0
    %693 = vmatpush.msra.mxu0 0.0
    %694 = vmatpush.msra.mxu0 0.0
    %695 = vmatpush.msra.mxu0 0.0
    %696 = vmatpush.msra.mxu0 0.0
    %697 = vmatpush.msra.mxu0 0.0
    %698 = vmatpush.msra.mxu0 0.0
    %699 = vmatpush.msra.mxu0 0.0
    %700 = vmatpush.msra.mxu0 %v658
    %701 = vmatpush.msra.mxu0 %v656
    %702 = vmatpush.msra.mxu0 %v654
    %703 = vmatpush.msra.mxu0 %v652
    %704 = vmatmul.f32.gmra.mxu0 %v292
    %v705 = vpop.f32.mrf.mxu0
    %v706 = vadd.f32 %v274, %v705
    %707 = vmatmul.f32.gmra.mxu0 %v295
    %v708 = vpop.f32.mrf.mxu0
    %v709 = vadd.f32 %v279, %v708
    %710 = vmatmul.f32.gmra.mxu0 %v298
    %v711 = vpop.f32.mrf.mxu0
    %v712 = vadd.f32 %v284, %v711
    %713 = vmatmul.f32.gmra.mxu0 %v301
    %v714 = vpop.f32.mrf.mxu0
    %v715 = vadd.f32 %v289, %v714
    %716 = vdwg.mxu0
    %v717 = vtanh.pop %v677
    %v718 = vtanh.pop %v706
    %v719 = vtanh.pop %v680
    %v720 = vtanh.pop %v709
    %v721 = vtanh.pop %v683
    %v722 = vtanh.pop %v712
    %v723 = vtanh.pop %v686
    %v724 = vtanh.pop %v715
    %725 = vmatpush.msra.mxu0 0.0
    %726 = vmatpush.msra.mxu0 0.0
    %727 = vmatpush.msra.mxu0 0.0
    %728 = vmatpush.msra.mxu0 0.0
    %729 = vmatpush.msra.mxu0 0.0
    %730 = vmatpush.msra.mxu0 0.0
    %731 = vmatpush.msra.mxu0 0.0
    %732 = vmatpush.msra.mxu0 0.0
    %733 = vmatpush.msra.mxu0 0.0
    %734 = vmatpush.msra.mxu0 0.0
    %735 = vmatpush.msra.mxu0 0.0
    %736 = vmatpush.msra.mxu0 0.0
    %737 = vmatpush.msra.mxu0 %v723
    %738 = vmatpush.msra.mxu0 %v721
    %739 = vmatpush.msra.mxu0 %v719
    %740 = vmatpush.msra.mxu0 %v717
    %741 = vmatmul.f32.gmra.mxu0 %v390
    %v742 = vpop.f32.mrf.mxu0
    %v743 = vadd.f32 %v372, %v742
    %744 = vmatmul.f32.gmra.mxu0 %v393
    %v745 = vpop.f32.mrf.mxu0
    %v746 = vadd.f32 %v377, %v745
    %747 = vmatmul.f32.gmra.mxu0 %v396
    %v748 = vpop.f32.mrf.mxu0
    %v749 = vadd.f32 %v382, %v748
    %750 = vmatmul.f32.gmra.mxu0 %v399
    %v751 = vpop.f32.mrf.mxu0
    %v752 = vadd.f32 %v387, %v751
    %753 = vdwg.mxu0
    %754 = vmatpush.msra.mxu0 0.0
    %755 = vmatpush.msra.mxu0 0.0
    %756 = vmatpush.msra.mxu0 0.0
    %757 = vmatpush.msra.mxu0 0.0
    %758 = vmatpush.msra.mxu0 0.0
    %759 = vmatpush.msra.mxu0 0.0
    %760 = vmatpush.msra.mxu0 0.0
    %761 = vmatpush.msra.mxu0 0.0
    %762 = vmatpush.msra.mxu0 0.0
    %763 = vmatpush.msra.mxu0 0.0
    %764 = vmatpush.msra.mxu0 0.0
    %765 = vmatpush.msra.mxu0 0.0
    %766 = vmatpush.msra.mxu0 %v724
    %767 = vmatpush.msra.mxu0 %v722
    %768 = vmatpush.msra.mxu0 %v720
    %769 = vmatpush.msra.mxu0 %v718
    %770 = vmatmul.f32.gmra.mxu0 %v390
    %v771 = vpop.f32.mrf.mxu0
    %v772 = vadd.f32 %v372, %v771
    %773 = vmatmul.f32.gmra.mxu0 %v393
    %v774 = vpop.f32.mrf.mxu0
    %v775 = vadd.f32 %v377, %v774
    %776 = vmatmul.f32.gmra.mxu0 %v396
    %v777 = vpop.f32.mrf.mxu0
    %v778 = vadd.f32 %v382, %v777
    %779 = vmatmul.f32.gmra.mxu0 %v399
    %v780 = vpop.f32.mrf.mxu0
    %v781 = vadd.f32 %v387, %v780
    %782 = vdwg.mxu0
    %v783 = vtanh.pop %v743
    %v784 = vtanh.pop %v772
    %v785 = vtanh.pop %v746
    %v786 = vtanh.pop %v775
    %v787 = vtanh.pop %v749
    %v788 = vtanh.pop %v778
    %v789 = vtanh.pop %v752
    %v790 = vtanh.pop %v781
    %791 = vmatpush.msra.mxu0 0.0
    %792 = vmatpush.msra.mxu0 0.0
    %793 = vmatpush.msra.mxu0 0.0
    %794 = vmatpush.msra.mxu0 0.0
    %795 = vmatpush.msra.mxu0 0.0
    %796 = vmatpush.msra.mxu0 0.0
    %797 = vmatpush.msra.mxu0 0.0
    %798 = vmatpush.msra.mxu0 0.0
    %799 = vmatpush.msra.mxu0 0.0
    %800 = vmatpush.msra.mxu0 0.0
    %801 = vmatpush.msra.mxu0 0.0
    %802 = vmatpush.msra.mxu0 0.0
    %803 = vmatpush.msra.mxu0 %v789
    %804 = vmatpush.msra.mxu0 %v787
    %805 = vmatpush.msra.mxu0 %v785
    %806 = vmatpush.msra.mxu0 %v783
    %807 = vmatmul.f32.gmra.mxu0 %v473
    %v808 = vpop.f32.mrf.mxu0
    %v809 = vadd.f32 %v470, %v808
    %810 = vdwg.mxu0
    %811 = vmatpush.msra.mxu0 0.0
    %812 = vmatpush.msra.mxu0 0.0
    %813 = vmatpush.msra.mxu0 0.0
    %814 = vmatpush.msra.mxu0 0.0
    %815 = vmatpush.msra.mxu0 0.0
    %816 = vmatpush.msra.mxu0 0.0
    %817 = vmatpush.msra.mxu0 0.0
    %818 = vmatpush.msra.mxu0 0.0
    %819 = vmatpush.msra.mxu0 0.0
    %820 = vmatpush.msra.mxu0 0.0
    %821 = vmatpush.msra.mxu0 0.0
    %822 = vmatpush.msra.mxu0 0.0
    %823 = vmatpush.msra.mxu0 %v790
    %824 = vmatpush.msra.mxu0 %v788
    %825 = vmatpush.msra.mxu0 %v786
    %826 = vmatpush.msra.mxu0 %v784
    %827 = vmatmul.f32.gmra.mxu0 %v473
    %v828 = vpop.f32.mrf.mxu0
    %v829 = vadd.f32 %v470, %v828
    %830 = vdwg.mxu0
    %v833 = vrot.slane %v829, 7
    %v834 = vsel %vm518, %v809, %v833
    %836 = vst.msk [vmem:[#allocation5 + $0x2] sm:$0x3] %vm524, %v834
    // Predicated region
    $region18: #{tpu_custom_call.1} parent=1 // pred_check
      _
    $region19: #{tpu_custom_call.1} parent=1 // pred_check_branch
      %838 = sbr.rel (0) target = $region21
    $region20: #{tpu_custom_call.1} parent=1 // pred_region
      %840 = vsyncadd [#allocation4], 0
      %s842 = sshll.u32 [#allocation5], 4
      %s843 = int_to_ptr.vmem [resolvable:$true] %s842
      %s844 = sshll.u32 %s3, 4
      %s845 = int_to_ptr.hbm [resolvable:$true] %s844
      %847 = dma.vmem_to_hbm [thread:$0]  %s843, 64, %s845, [#allocation4]
    $region21: #{tpu_custom_call.1} parent=1 // pred_fallthru
      _
    // Predicated region
    $region22: #{tpu_custom_call.1} parent=1 // pred_check
      _
    $region23: #{tpu_custom_call.1} parent=1 // pred_check_branch
      %849 = sbr.rel (0) target = $region25
    $region24: #{tpu_custom_call.1} parent=1 // pred_region
      %851 = dma.done [#allocation4], 64
    $region25: #{tpu_custom_call.1} parent=1 // pred_fallthru
      _
    %852 = vsyncpa [#allocation3], 1
    %853 = vsyncpa [#allocation4], 1

</llo_original>
